<compile_context>
chip_gen: v7x
topology: tpu7x:2x2x1
jax: 0.10.0
libtpu: 0.0.40
codegen_flags: <defaults>
</compile_context>

<pallas_src>
import functools
import math

import jax
import jax.numpy as jnp
from jax.experimental import pallas as pl
from jax.experimental.pallas import tpu as pltpu

NUM_PERIODS = 9


def _soft_trade_kernel(x_ref, w_ref, aux_ref, perm_ref, levels_ref, soft_ref,
                       *, num_levels):
    # x_ref:      (TM, H)   f32 row tile of the flattened input
    # w_ref:      (PF, H)   f32 weight, LEVEL-major rows (row j = l*P + p)
    # aux_ref:    (PF, 2)   f32 columns: [bias_lm, linspace_lm]
    # perm_ref:   (PF, PF)  f32 permutation matrix, perm[l*P+p, p*Lv+l] = 1
    # levels_ref: (TM, PF)  -> trade_levels, period-major (PyTorch) layout
    # soft_ref:   (P, TM)   -> soft_trade, transposed (lane-dense store)
    P = NUM_PERIODS
    x = x_ref[...]
    w = w_ref[...]
    bias = aux_ref[:, 0:1]                               # (PF, 1)
    lin = aux_ref[:, 1:2]                                # (PF, 1)

    # Lane-dense, transposed logits: (PF, TM), contracting H of both operands.
    logits = jax.lax.dot_general(w, x, (((1,), (1,)), ((), ())),
                                 preferred_element_type=jnp.float32)
    amt = jax.nn.sigmoid(logits + bias)                  # single EUP pass
    lvls = amt * lin                                     # trade_levels (level-major^T)
    prof = jnp.where(amt > 0.9, 0.0, lvls)               # profitable_trades

    # Per-period argmax(|prof|) over levels: contiguous (P, TM) sublane slabs;
    # strict '>' keeps the lowest level index on ties (torch.argmax rule).
    best = prof[0:P, :]
    best_abs = jnp.abs(best)
    for l in range(1, num_levels):
        cur = prof[l * P:(l + 1) * P, :]
        cur_abs = jnp.abs(cur)
        take = cur_abs > best_abs
        best = jnp.where(take, cur, best)
        best_abs = jnp.where(take, cur_abs, best_abs)
    soft_ref[...] = best.astype(soft_ref.dtype)          # lane-dense (P, TM) store

    # trade_levels in the PyTorch layout via one MXU transpose+permute:
    # out[t, p*Lv + l] = lvls[l*P + p, t].
    levels_ref[...] = jax.lax.dot_general(
        lvls, perm_ref[...], (((0,), (0,)), ((), ())),
        preferred_element_type=jnp.float32).astype(levels_ref.dtype)


def _cdiv(a, b):
    return -(-a // b)


def _choose_row_tile(R, max_tm=2048):
    # Single grid step whenever the whole problem fits one big tile (block dims
    # equal to the full array dims are always legal).
    if R <= max_tm:
        return R
    steps = _cdiv(R, max_tm)
    if steps <= 8 and steps % 2:
        steps += 1                      # keep both v7x TensorCores balanced
    # Lane-dense soft block (P, TM) needs 128 | TM when TM != R.
    tm = _cdiv(_cdiv(R, steps), 128) * 128
    return max(128, min(tm, max_tm))


def soft_trade_forward(mod, weight, bias, linspace):
    """mod: (B, L, H) f32; weight: (P*Lv, H) nn.Linear layout; bias: (P*Lv,);
    linspace: (Lv,).  Returns (trade_levels (B,L,P,Lv), soft_trade (B,L,P))."""
    B, L, H = mod.shape
    Lv = int(linspace.shape[0])
    P = NUM_PERIODS
    PF = P * Lv
    R = B * L

    x = mod.reshape(R, H)                                     # free reshape, stays f32

    # Level-major reordering of the tiny projection parameters (row j = l*P + p).
    j = jnp.arange(PF)
    src = (j % P) * Lv + (j // P)                             # source PyTorch row p*Lv + l
    w_lm = weight.astype(jnp.float32)[src]                    # (PF, H)
    aux = jnp.stack([bias.astype(jnp.float32)[src],
                     linspace.astype(jnp.float32)[j // P]], axis=1)   # (PF, 2)

    # Constant permutation matrix for the in-kernel transpose+permute.
    rows = (j % Lv) * P + (j // Lv)                           # level-major row feeding col j
    perm = jnp.zeros((PF, PF), jnp.float32).at[rows, j].set(1.0)

    TM = _choose_row_tile(R)
    grid = (_cdiv(R, TM),)                                    # ragged last tile is fine

    kernel = functools.partial(_soft_trade_kernel, num_levels=Lv)
    levels_flat, soft_t = pl.pallas_call(
        kernel,
        out_shape=(jax.ShapeDtypeStruct((R, PF), jnp.float32),
                   jax.ShapeDtypeStruct((P, R), jnp.float32)),
        grid_spec=pltpu.PrefetchScalarGridSpec(
            num_scalar_prefetch=0,
            grid=grid,
            in_specs=[
                pl.BlockSpec((TM, H), lambda i: (i, 0)),
                pl.BlockSpec((PF, H), lambda i: (0, 0)),
                pl.BlockSpec((PF, 2), lambda i: (0, 0)),
                pl.BlockSpec((PF, PF), lambda i: (0, 0)),
            ],
            out_specs=[
                pl.BlockSpec((TM, PF), lambda i: (i, 0)),
                pl.BlockSpec((P, TM), lambda i: (0, i)),
            ],
        ),
        compiler_params=pltpu.CompilerParams(dimension_semantics=("parallel",)),
    )(x, w_lm, aux, perm)

    trade_levels = levels_flat.reshape(B, L, P, Lv)
    # (P, R) -> (B, L, P): tiny wrapper-side transpose (layout plumbing only).
    soft_trade = soft_t.T.reshape(B, L, P)
    return trade_levels, soft_trade


if __name__ == "__main__":
    hidden_size = 32
    num_levels = 5          # must be odd
    B, L = 2, 8

    key = jax.random.PRNGKey(0)
    k1, k2, k3 = jax.random.split(key, 3)
    bound = 1.0 / math.sqrt(hidden_size)
    # Deterministic synthetic parameters (shapes match nn.Linear(hidden, 9*num_levels)).
    weight = jax.random.uniform(k1, (NUM_PERIODS * num_levels, hidden_size),
                                jnp.float32, -bound, bound)
    bias = jax.random.uniform(k2, (NUM_PERIODS * num_levels,), jnp.float32, -bound, bound)
    linspace = jnp.linspace(-1.0, 1.0, num_levels, dtype=jnp.float32)
    mod = jax.random.normal(k3, (B, L, hidden_size), dtype=jnp.float32)

    trade_levels, soft_trade = jax.jit(soft_trade_forward)(mod, weight, bias, linspace)
    jax.block_until_ready((trade_levels, soft_trade))

    # Pure-JAX float32 reference (PyTorch forward semantics, full-precision matmul).
    logits = (jnp.dot(mod.reshape(-1, hidden_size), weight.T,
                      preferred_element_type=jnp.float32,
                      precision=jax.lax.Precision.HIGHEST)
              + bias).reshape(B, L, NUM_PERIODS, num_levels)
    amt = jax.nn.sigmoid(logits)
    ref_levels = amt * linspace
    prof = jnp.where(amt > 0.9, 0.0, ref_levels)
    idx = jnp.argmax(jnp.abs(prof), axis=-1)
    ref_soft = jnp.take_along_axis(prof, idx[..., None], axis=-1)[..., 0]

    assert trade_levels.shape == (B, L, NUM_PERIODS, num_levels)
    assert soft_trade.shape == (B, L, NUM_PERIODS)
    assert bool(jnp.all(jnp.isfinite(trade_levels))) and bool(jnp.all(jnp.isfinite(soft_trade)))
    # 1e-3 tolerance leaves headroom for the MXU's multi-pass f32 matmul rounding;
    # real layout/permutation bugs produce errors >= O(0.05).
    assert bool(jnp.allclose(trade_levels, ref_levels, atol=1e-3, rtol=1e-3)), \
        float(jnp.max(jnp.abs(trade_levels - ref_levels)))
    assert bool(jnp.allclose(soft_trade, ref_soft, atol=1e-3, rtol=1e-3)), \
        float(jnp.max(jnp.abs(soft_trade - ref_soft)))

    print("KERNEL_OK")
</pallas_src>

<mosaic_0001>
module attributes {stable_mosaic.version = 11 : i64} {
  func.func @_soft_trade_kernel(%arg0: i32, %arg1: memref<16x32xf32, #tpu.memory_space<vmem>>, %arg2: memref<45x32xf32, #tpu.memory_space<vmem>>, %arg3: memref<45x2xf32, #tpu.memory_space<vmem>>, %arg4: memref<45x45xf32, #tpu.memory_space<vmem>>, %arg5: memref<16x45xf32, #tpu.memory_space<vmem>>, %arg6: memref<9x16xf32, #tpu.memory_space<vmem>>) attributes {dimension_semantics = [#tpu.dimension_semantics<parallel>], iteration_bounds = array<i64: 1>, scalar_prefetch = 0 : i64, scratch_operands = 0 : i64, tpu.core_type = #tpu.core_type<tc>, window_params = [{transform_indices = @transform_0, window_bounds = array<i64: 16, 32>}, {pipeline_mode = #tpu.pipeline_mode<synchronous>, transform_indices = @transform_1, window_bounds = array<i64: 45, 32>}, {pipeline_mode = #tpu.pipeline_mode<synchronous>, transform_indices = @transform_2, window_bounds = array<i64: 45, 2>}, {pipeline_mode = #tpu.pipeline_mode<synchronous>, transform_indices = @transform_3, window_bounds = array<i64: 45, 45>}, {transform_indices = @transform_4, window_bounds = array<i64: 16, 45>}, {transform_indices = @transform_5, window_bounds = array<i64: 9, 16>}]} {
    %c0 = arith.constant 0 : index
    %c0_0 = arith.constant 0 : index
    %0 = vector.load %arg1[%c0, %c0_0] : memref<16x32xf32, #tpu.memory_space<vmem>>, vector<16x32xf32>
    %c0_1 = arith.constant 0 : index
    %c0_2 = arith.constant 0 : index
    %1 = vector.load %arg2[%c0_1, %c0_2] : memref<45x32xf32, #tpu.memory_space<vmem>>, vector<45x32xf32>
    %c0_3 = arith.constant 0 : index
    %c0_4 = arith.constant 0 : index
    %2 = vector.load %arg3[%c0_3, %c0_4] : memref<45x2xf32, #tpu.memory_space<vmem>>, vector<45x1xf32>
    %c0_5 = arith.constant 0 : index
    %c1 = arith.constant 1 : index
    %3 = vector.load %arg3[%c0_5, %c1] : memref<45x2xf32, #tpu.memory_space<vmem>>, vector<45x1xf32>
    %cst = arith.constant dense<0.000000e+00> : vector<45x16xf32>
    %4 = tpu.matmul %1, %0, %cst {dimension_numbers = #tpu.dot_dimension_numbers<[1], [1], [0], [0], [0, 0, 1, 0], [], []>} : vector<45x32xf32>, vector<16x32xf32>, vector<45x16xf32> -> vector<45x16xf32>
    %5 = vector.broadcast %2 : vector<45x1xf32> to vector<45x16xf32>
    %6 = arith.addf %4, %5 : vector<45x16xf32>
    %7 = arith.negf %6 : vector<45x16xf32>
    %8 = math.exp %7 : vector<45x16xf32>
    %cst_6 = arith.constant 1.000000e+00 : f32
    %9 = vector.broadcast %cst_6 : f32 to vector<45x16xf32>
    %10 = arith.addf %9, %8 : vector<45x16xf32>
    %11 = arith.divf %9, %10 : vector<45x16xf32>
    %12 = vector.broadcast %3 : vector<45x1xf32> to vector<45x16xf32>
    %13 = arith.mulf %11, %12 : vector<45x16xf32>
    %cst_7 = arith.constant 0.899999976 : f32
    %14 = vector.broadcast %cst_7 : f32 to vector<45x16xf32>
    %15 = arith.cmpf ogt, %11, %14 : vector<45x16xf32>
    %cst_8 = arith.constant 0.000000e+00 : f32
    %16 = vector.broadcast %cst_8 : f32 to vector<45x16xf32>
    %17 = arith.select %15, %16, %13 : vector<45x16xi1>, vector<45x16xf32>
    %18 = vector.extract_strided_slice %17 {offsets = [0, 0], sizes = [9, 16], strides = [1, 1]} : vector<45x16xf32> to vector<9x16xf32>
    %19 = math.absf %18 : vector<9x16xf32>
    %20 = vector.extract_strided_slice %17 {offsets = [9, 0], sizes = [9, 16], strides = [1, 1]} : vector<45x16xf32> to vector<9x16xf32>
    %21 = math.absf %20 : vector<9x16xf32>
    %22 = arith.cmpf ogt, %21, %19 : vector<9x16xf32>
    %23 = arith.select %22, %20, %18 : vector<9x16xi1>, vector<9x16xf32>
    %24 = arith.select %22, %21, %19 : vector<9x16xi1>, vector<9x16xf32>
    %25 = vector.extract_strided_slice %17 {offsets = [18, 0], sizes = [9, 16], strides = [1, 1]} : vector<45x16xf32> to vector<9x16xf32>
    %26 = math.absf %25 : vector<9x16xf32>
    %27 = arith.cmpf ogt, %26, %24 : vector<9x16xf32>
    %28 = arith.select %27, %25, %23 : vector<9x16xi1>, vector<9x16xf32>
    %29 = arith.select %27, %26, %24 : vector<9x16xi1>, vector<9x16xf32>
    %30 = vector.extract_strided_slice %17 {offsets = [27, 0], sizes = [9, 16], strides = [1, 1]} : vector<45x16xf32> to vector<9x16xf32>
    %31 = math.absf %30 : vector<9x16xf32>
    %32 = arith.cmpf ogt, %31, %29 : vector<9x16xf32>
    %33 = arith.select %32, %30, %28 : vector<9x16xi1>, vector<9x16xf32>
    %34 = arith.select %32, %31, %29 : vector<9x16xi1>, vector<9x16xf32>
    %35 = vector.extract_strided_slice %17 {offsets = [36, 0], sizes = [9, 16], strides = [1, 1]} : vector<45x16xf32> to vector<9x16xf32>
    %36 = math.absf %35 : vector<9x16xf32>
    %37 = arith.cmpf ogt, %36, %34 : vector<9x16xf32>
    %38 = arith.select %37, %35, %33 : vector<9x16xi1>, vector<9x16xf32>
    %c0_9 = arith.constant 0 : index
    %c0_10 = arith.constant 0 : index
    %39 = vector.load %arg6[%c0_9, %c0_10] : memref<9x16xf32, #tpu.memory_space<vmem>>, vector<9x16xf32>
    tpu.vector_store %arg6[%c0_9, %c0_10], %38 {strides = array<i32>} : memref<9x16xf32, #tpu.memory_space<vmem>>, vector<9x16xf32>,
    %c0_11 = arith.constant 0 : index
    %c0_12 = arith.constant 0 : index
    %40 = vector.load %arg4[%c0_11, %c0_12] : memref<45x45xf32, #tpu.memory_space<vmem>>, vector<45x45xf32>
    %cst_13 = arith.constant dense<0.000000e+00> : vector<16x45xf32>
    %41 = tpu.matmul %13, %40, %cst_13 {dimension_numbers = #tpu.dot_dimension_numbers<[0], [0], [1], [1], [0, 1, 1, 1], [], []>} : vector<45x16xf32>, vector<45x45xf32>, vector<16x45xf32> -> vector<16x45xf32>
    %c0_14 = arith.constant 0 : index
    %c0_15 = arith.constant 0 : index
    %42 = vector.load %arg5[%c0_14, %c0_15] : memref<16x45xf32, #tpu.memory_space<vmem>>, vector<16x45xf32>
    tpu.vector_store %arg5[%c0_14, %c0_15], %41 {strides = array<i32>} : memref<16x45xf32, #tpu.memory_space<vmem>>, vector<16x45xf32>,
    return
  }
  func.func @transform_0(%arg0: i32) -> (i32, i32) {
    %c0_i32 = arith.constant 0 : i32
    %c0_i32_0 = arith.constant 0 : i32
    return %arg0, %c0_i32 : i32, i32
  }
  func.func @transform_1(%arg0: i32) -> (i32, i32) {
    %c0_i32 = arith.constant 0 : i32
    %c0_i32_0 = arith.constant 0 : i32
    %c0_i32_1 = arith.constant 0 : i32
    return %c0_i32, %c0_i32_0 : i32, i32
  }
  func.func @transform_2(%arg0: i32) -> (i32, i32) {
    %c0_i32 = arith.constant 0 : i32
    %c0_i32_0 = arith.constant 0 : i32
    %c0_i32_1 = arith.constant 0 : i32
    return %c0_i32, %c0_i32_0 : i32, i32
  }
  func.func @transform_3(%arg0: i32) -> (i32, i32) {
    %c0_i32 = arith.constant 0 : i32
    %c0_i32_0 = arith.constant 0 : i32
    %c0_i32_1 = arith.constant 0 : i32
    return %c0_i32, %c0_i32_0 : i32, i32
  }
  func.func @transform_4(%arg0: i32) -> (i32, i32) {
    %c0_i32 = arith.constant 0 : i32
    %c0_i32_0 = arith.constant 0 : i32
    return %arg0, %c0_i32 : i32, i32
  }
  func.func @transform_5(%arg0: i32) -> (i32, i32) {
    %c0_i32 = arith.constant 0 : i32
    %c0_i32_0 = arith.constant 0 : i32
    return %c0_i32, %arg0 : i32, i32
  }
}

</mosaic_0001>

<llo_original>
// kernel: soft_trade_forward.1
$region0: #{soft_trade_forward.1}
  #allocation0 [shape = 'u32[]', space=smem, size = 0x4, offset = 0x4, fixed_abs, tag = 'smem constant byte address 0x4 - core index']
  #allocation1 [shape = 'u32[144,128]{1,0:T(1,128)}', space=vmem, size = 0x12000, scoped, tag = 'internal scratch']
  %s0 = inlined_call_operand.vmem [shape: f32[16,32], index: 0, kind: input, shape index: {}]
  %s1 = inlined_call_operand.vmem [shape: f32[45,32], index: 1, kind: input, shape index: {}]
  %s2 = inlined_call_operand.vmem [shape: f32[45,2], index: 2, kind: input, shape index: {}]
  %s3 = inlined_call_operand.vmem [shape: f32[45,45], index: 3, kind: input, shape index: {}]
  %s4 = inlined_call_operand.vmem [shape: f32[16,45], index: 4, kind: output, shape index: {0}]
  %s5 = inlined_call_operand.vmem [shape: f32[9,16], index: 5, kind: output, shape index: {1}]
  %6 = xla_tuple %s4, %s5
  %s7 = sld [smem:[#allocation0]]
  $region34: #{soft_trade_forward.1} parent=0
    _
  %s9 = ssub.s32 1, %s7
  %s10 = scalar_select 0, %s9, %s7
  // Predicated region
  $region2: #{soft_trade_forward.1} parent=0 // pred_check
    _
  $region3: #{soft_trade_forward.1} parent=0 // pred_check_branch
    %12 = sbr.rel (0) target = $region5
  $region4: #{soft_trade_forward.1} parent=0 // pred_region
    _
  $region5: #{soft_trade_forward.1} parent=0 // pred_fallthru
    _
  // Predicated region
  $region6: #{soft_trade_forward.1} parent=0 // pred_check
    _
  $region7: #{soft_trade_forward.1} parent=0 // pred_check_branch
    %14 = sbr.rel (0) target = $region9
  $region8: #{soft_trade_forward.1} parent=0 // pred_region
    _
  $region9: #{soft_trade_forward.1} parent=0 // pred_fallthru
    _
  // Predicated region
  $region10: #{soft_trade_forward.1} parent=0 // pred_check
    _
  $region11: #{soft_trade_forward.1} parent=0 // pred_check_branch
    %16 = sbr.rel (0) target = $region13
  $region12: #{soft_trade_forward.1} parent=0 // pred_region
    _
  $region13: #{soft_trade_forward.1} parent=0 // pred_fallthru
    _
  // Predicated region
  $region14: #{soft_trade_forward.1} parent=0 // pred_check
    _
  $region15: #{soft_trade_forward.1} parent=0 // pred_check_branch
    %18 = sbr.rel (0) target = $region17
  $region16: #{soft_trade_forward.1} parent=0 // pred_region
    _
  $region17: #{soft_trade_forward.1} parent=0 // pred_fallthru
    _
  %v19 = vld [vmem:[%s0] sm:$0xff]
  %v20 = vld [vmem:[%s0 + $0x8] sm:$0xff]
  %v21 = vld [vmem:[%s1] sm:$0xff]
  %v22 = vld [vmem:[%s1 + $0x8] sm:$0xff]
  %v23 = vld [vmem:[%s1 + $0x10] sm:$0xff]
  %v24 = vld [vmem:[%s1 + $0x18] sm:$0xff]
  %v25 = vld [vmem:[%s1 + $0x20] sm:$0xff]
  %v26 = vld [vmem:[%s1 + $0x28] sm:$0x1f]
  %v27 = vld [vmem:[%s2] sm:$0xff]
  %v28 = vld [vmem:[%s2 + $0x8] sm:$0xff]
  %v29 = vld [vmem:[%s2 + $0x10] sm:$0xff]
  %v30 = vld [vmem:[%s2 + $0x18] sm:$0xff]
  %v31 = vld [vmem:[%s2 + $0x20] sm:$0xff]
  %v32 = vld [vmem:[%s2 + $0x28] sm:$0x1f]
  %34 = vset.pattern.permute.xlu0 0
  %35 = vperm.xlu0 %34, %v27
  %v36 = vpop.permute.xlu0 %35
  %39 = vset.pattern.permute.xlu0 0
  %40 = vperm.xlu0 %39, %v28
  %v41 = vpop.permute.xlu0 %40
  %44 = vset.pattern.permute.xlu0 0
  %45 = vperm.xlu0 %44, %v29
  %v46 = vpop.permute.xlu0 %45
  %49 = vset.pattern.permute.xlu0 0
  %50 = vperm.xlu0 %49, %v30
  %v51 = vpop.permute.xlu0 %50
  %54 = vset.pattern.permute.xlu0 0
  %55 = vperm.xlu0 %54, %v31
  %v56 = vpop.permute.xlu0 %55
  %59 = vset.pattern.permute.xlu0 0
  %60 = vperm.xlu0 %59, %v32
  %v61 = vpop.permute.xlu0 %60
  %vm63 = vcmask 261120
  %v65 = vsel %vm63, %v21, 0
  %v68 = vsel %vm63, %v22, 0
  %v71 = vsel %vm63, %v23, 0
  %v74 = vsel %vm63, %v24, 0
  %v77 = vsel %vm63, %v25, 0
  %v80 = vsel %vm63, %v26, 0
  %v83 = vsel %vm63, %v19, 0
  %v86 = vsel %vm63, %v20, 0
  %88 = vmatprep.subr.mxu0 0.0
  %89 = vmatpush1.xpose.msra.mxu0 %v83
  %90 = vmatprep.subr.mxu0 0.0
  %91 = vmatpush1.xpose.msra.mxu0 %v86
  %92 = vmatprep.subr.mxu0 0.0
  %93 = vmatpush1.xpose.msra.mxu0 0.0
  %94 = vmatprep.subr.mxu0 0.0
  %95 = vmatpush1.xpose.msra.mxu0 0.0
  %96 = vmatprep.subr.mxu0 0.0
  %97 = vmatpush1.xpose.msra.mxu0 0.0
  %98 = vmatprep.subr.mxu0 0.0
  %99 = vmatpush1.xpose.msra.mxu0 0.0
  %100 = vmatprep.subr.mxu0 0.0
  %101 = vmatpush1.xpose.msra.mxu0 0.0
  %102 = vmatprep.subr.mxu0 0.0
  %103 = vmatpush1.xpose.msra.mxu0 0.0
  %104 = vmatprep.subr.mxu0 0.0
  %105 = vmatpush1.xpose.msra.mxu0 0.0
  %106 = vmatprep.subr.mxu0 0.0
  %107 = vmatpush1.xpose.msra.mxu0 0.0
  %108 = vmatprep.subr.mxu0 0.0
  %109 = vmatpush1.xpose.msra.mxu0 0.0
  %110 = vmatprep.subr.mxu0 0.0
  %111 = vmatpush1.xpose.msra.mxu0 0.0
  %112 = vmatprep.subr.mxu0 0.0
  %113 = vmatpush1.xpose.msra.mxu0 0.0
  %114 = vmatprep.subr.mxu0 0.0
  %115 = vmatpush1.xpose.msra.mxu0 0.0
  %116 = vmatprep.subr.mxu0 0.0
  %117 = vmatpush1.xpose.msra.mxu0 0.0
  %118 = vmatprep.subr.mxu0 0.0
  %119 = vmatpush1.xpose.msra.mxu0 0.0
  %120 = vmatprep.subr.mxu0 0.0
  %121 = vmatpush1.xpose.msra.mxu0 0.0
  %122 = vmatprep.subr.mxu0 0.0
  %123 = vmatpush1.xpose.msra.mxu0 0.0
  %124 = vmatprep.subr.mxu0 0.0
  %125 = vmatpush1.xpose.msra.mxu0 0.0
  %126 = vmatprep.subr.mxu0 0.0
  %127 = vmatpush1.xpose.msra.mxu0 0.0
  %128 = vmatprep.subr.mxu0 0.0
  %129 = vmatpush1.xpose.msra.mxu0 0.0
  %130 = vmatprep.subr.mxu0 0.0
  %131 = vmatpush1.xpose.msra.mxu0 0.0
  %132 = vmatprep.subr.mxu0 0.0
  %133 = vmatpush1.xpose.msra.mxu0 0.0
  %134 = vmatprep.subr.mxu0 0.0
  %135 = vmatpush1.xpose.msra.mxu0 0.0
  %136 = vmatprep.subr.mxu0 0.0
  %137 = vmatpush1.xpose.msra.mxu0 0.0
  %138 = vmatprep.subr.mxu0 0.0
  %139 = vmatpush1.xpose.msra.mxu0 0.0
  %140 = vmatprep.subr.mxu0 0.0
  %141 = vmatpush1.xpose.msra.mxu0 0.0
  %142 = vmatprep.subr.mxu0 0.0
  %143 = vmatpush1.xpose.msra.mxu0 0.0
  %144 = vmatprep.subr.mxu0 0.0
  %145 = vmatpush1.xpose.msra.mxu0 0.0
  %146 = vmatprep.subr.mxu0 0.0
  %147 = vmatpush1.xpose.msra.mxu0 0.0
  %148 = vmatprep.subr.mxu0 0.0
  %149 = vmatpush1.xpose.msra.mxu0 0.0
  %150 = vmatprep.subr.mxu0 0.0
  %151 = vmatpush1.xpose.msra.mxu0 0.0
  %152 = vmatprep.mubr.f32.mxu0 0.0
  %153 = vmatmul.mubr.f32.gmra.mrb[0].mxu0 %v65
  %v154 = vpop.f32.mrb[0].mxu0
  %v155 = vadd.f32 %v36, %v154
  %v156 = vpop.f32.mrb[0].mxu0
  %157 = vmatprep.mubr.f32.mxu0 0.0
  %158 = vmatmul.mubr.f32.gmra.mrb[0].mxu0 %v68
  %v159 = vpop.f32.mrb[0].mxu0
  %v160 = vadd.f32 %v41, %v159
  %v161 = vpop.f32.mrb[0].mxu0
  %162 = vmatprep.mubr.f32.mxu0 0.0
  %163 = vmatmul.mubr.f32.gmra.mrb[0].mxu0 %v71
  %v164 = vpop.f32.mrb[0].mxu0
  %v165 = vadd.f32 %v46, %v164
  %v166 = vpop.f32.mrb[0].mxu0
  %167 = vmatprep.mubr.f32.mxu0 0.0
  %168 = vmatmul.mubr.f32.gmra.mrb[0].mxu0 %v74
  %v169 = vpop.f32.mrb[0].mxu0
  %v170 = vadd.f32 %v51, %v169
  %v171 = vpop.f32.mrb[0].mxu0
  %172 = vmatprep.mubr.f32.mxu0 0.0
  %173 = vmatmul.mubr.f32.gmra.mrb[0].mxu0 %v77
  %v174 = vpop.f32.mrb[0].mxu0
  %v175 = vadd.f32 %v56, %v174
  %v176 = vpop.f32.mrb[0].mxu0
  %177 = vmatprep.mubr.f32.mxu0 0.0
  %178 = vmatmul.mubr.f32.gmra.mrb[0].mxu0 %v80
  %v179 = vpop.f32.mrb[0].mxu0
  %v180 = vadd.f32 %v61, %v179
  %v181 = vpop.f32.mrb[0].mxu0
  %182 = vdwg.mxu0
  %v183 = vxor.u32 %v155, 2147483648
  %v184 = vxor.u32 %v160, 2147483648
  %v185 = vxor.u32 %v165, 2147483648
  %v186 = vxor.u32 %v170, 2147483648
  %v187 = vxor.u32 %v175, 2147483648
  %v188 = vxor.u32 %v180, 2147483648
  %v189 = vmul.f32 %v183, 1.442695
  %v190 = vpow.pop %v189
  %v191 = vmul.f32 %v184, 1.442695
  %v192 = vpow.pop %v191
  %v193 = vmul.f32 %v185, 1.442695
  %v194 = vpow.pop %v193
  %v195 = vmul.f32 %v186, 1.442695
  %v196 = vpow.pop %v195
  %v197 = vmul.f32 %v187, 1.442695
  %v198 = vpow.pop %v197
  %v199 = vmul.f32 %v188, 1.442695
  %v200 = vpow.pop %v199
  %v201 = vadd.f32 %v190, 1.0
  %v202 = vadd.f32 %v192, 1.0
  %v203 = vadd.f32 %v194, 1.0
  %v204 = vadd.f32 %v196, 1.0
  %v205 = vadd.f32 %v198, 1.0
  %v206 = vadd.f32 %v200, 1.0
  %v207 = vrcp.pop %v201
  %v208 = vmul.f32 1.0, %v207
  %v209 = vrcp.pop %v202
  %v210 = vmul.f32 1.0, %v209
  %v211 = vrcp.pop %v203
  %v212 = vmul.f32 1.0, %v211
  %v213 = vrcp.pop %v204
  %v214 = vmul.f32 1.0, %v213
  %v215 = vrcp.pop %v205
  %v216 = vmul.f32 1.0, %v215
  %v217 = vrcp.pop %v206
  %v218 = vmul.f32 1.0, %v217
  %219 = vset.pattern.permute.xlu0 1
  %220 = vperm.xlu0 %219, %v27
  %v221 = vpop.permute.xlu0 %220
  %223 = vset.pattern.permute.xlu0 1
  %224 = vperm.xlu0 %223, %v28
  %v225 = vpop.permute.xlu0 %224
  %227 = vset.pattern.permute.xlu0 1
  %228 = vperm.xlu0 %227, %v29
  %v229 = vpop.permute.xlu0 %228
  %231 = vset.pattern.permute.xlu0 1
  %232 = vperm.xlu0 %231, %v30
  %v233 = vpop.permute.xlu0 %232
  %235 = vset.pattern.permute.xlu0 1
  %236 = vperm.xlu0 %235, %v31
  %v237 = vpop.permute.xlu0 %236
  %239 = vset.pattern.permute.xlu0 1
  %240 = vperm.xlu0 %239, %v32
  %v241 = vpop.permute.xlu0 %240
  %v243 = vmul.f32 %v208, %v221
  %v244 = vmul.f32 %v210, %v225
  %v245 = vmul.f32 %v212, %v229
  %v246 = vmul.f32 %v214, %v233
  %v247 = vmul.f32 %v216, %v237
  %v248 = vmul.f32 %v218, %v241
  %vm249 = vcmp.gt.f32.partialorder %v208, 0.9
  %vm250 = vcmp.gt.f32.partialorder %v210, 0.9
  %vm251 = vcmp.gt.f32.partialorder %v212, 0.9
  %vm252 = vcmp.gt.f32.partialorder %v214, 0.9
  %vm253 = vcmp.gt.f32.partialorder %v216, 0.9
  %vm254 = vcmp.gt.f32.partialorder %v218, 0.9
  %v255 = vsel %vm249, 0.0, %v243
  %v256 = vsel %vm250, 0.0, %v244
  %v257 = vsel %vm251, 0.0, %v245
  %v258 = vsel %vm252, 0.0, %v246
  %v259 = vsel %vm253, 0.0, %v247
  %v260 = vsel %vm254, 0.0, %v248
  %v261 = vand.u32 2147483647, %v255
  %v262 = vand.u32 2147483647, %v256
  %v263 = vand.u32 2147483647, %v257
  %vm266 = vcmask 1040384
  %v267 = vrot.slane %v261, 7
  %v268 = vrot.slane %v262, 7
  %v269 = vsel %vm266, %v267, %v268
  %vm272 = vcmp.gt.f32.partialorder %v262, %v267
  %vm273 = vcmp.gt.f32.partialorder %v263, %v269
  %v276 = vrot.slane %v255, 7
  %v277 = vrot.slane %v256, 7
  %v278 = vsel %vm266, %v276, %v277
  %v281 = vsel %vm272, %v256, %v276
  %v282 = vsel %vm273, %v257, %v278
  %v283 = vsel %vm272, %v262, %v267
  %v284 = vsel %vm273, %v263, %v269
  %v285 = vand.u32 2147483647, %v258
  %v288 = vrot.slane %v283, 7
  %v289 = vrot.slane %v284, 7
  %v290 = vsel %vm266, %v288, %v289
  %vm293 = vcmp.gt.f32.partialorder %v263, %v288
  %vm294 = vcmp.gt.f32.partialorder %v285, %v290
  %v297 = vrot.slane %v281, 7
  %v298 = vrot.slane %v282, 7
  %v299 = vsel %vm266, %v297, %v298
  %v302 = vsel %vm293, %v257, %v297
  %v303 = vsel %vm294, %v258, %v299
  %v304 = vsel %vm293, %v263, %v288
  %v305 = vsel %vm294, %v285, %v290
  %v306 = vand.u32 2147483647, %v259
  %v309 = vrot.slane %v304, 7
  %v310 = vrot.slane %v305, 7
  %v311 = vsel %vm266, %v309, %v310
  %vm314 = vcmp.gt.f32.partialorder %v285, %v309
  %vm315 = vcmp.gt.f32.partialorder %v306, %v311
  %v318 = vrot.slane %v302, 7
  %v319 = vrot.slane %v303, 7
  %v320 = vsel %vm266, %v318, %v319
  %v323 = vsel %vm314, %v258, %v318
  %v324 = vsel %vm315, %v259, %v320
  %v325 = vsel %vm314, %v285, %v309
  %v326 = vsel %vm315, %v306, %v311
  %v327 = vand.u32 2147483647, %v260
  %v330 = vrot.slane %v325, 7
  %v331 = vrot.slane %v326, 7
  %v332 = vsel %vm266, %v330, %v331
  %vm335 = vcmp.gt.f32.partialorder %v306, %v330
  %vm336 = vcmp.gt.f32.partialorder %v327, %v332
  %v339 = vrot.slane %v323, 7
  %v340 = vrot.slane %v324, 7
  %v341 = vsel %vm266, %v339, %v340
  %v344 = vsel %vm335, %v259, %v339
  %v345 = vsel %vm336, %v260, %v341
  %vm346 = vcmask 130052
  %347 = vst.msk [vmem:[%s5 - $0x4] sm:$0xf0] %vm346, %v344
  %vm348 = vcmask 126976
  %349 = vst.msk [vmem:[%s5 + $0x4] sm:$0x1f] %vm348, %v345
  %v350 = vld [vmem:[%s3] sm:$0xff]
  %v351 = vld [vmem:[%s3 + $0x8] sm:$0xff]
  %v352 = vld [vmem:[%s3 + $0x10] sm:$0xff]
  %v353 = vld [vmem:[%s3 + $0x18] sm:$0xff]
  %v354 = vld [vmem:[%s3 + $0x20] sm:$0xff]
  %v355 = vld [vmem:[%s3 + $0x28] sm:$0x1f]
  %356 = vxpose.xlu0.b32.start [1/16] %v243, 128
  %357 = vxpose.xlu0.b32.cont [2/16] %v244, 128
  %358 = vxpose.xlu0.b32.cont [3/16] %v245, 128
  %359 = vxpose.xlu0.b32.cont [4/16] %v246, 128
  %360 = vxpose.xlu0.b32.cont [5/16] %v247, 128
  %361 = vxpose.xlu0.b32.cont [6/16] %v248, 128
  %362 = vxpose.xlu0.b32.cont [7/16] 0.0, 128
  %363 = vxpose.xlu0.b32.cont [8/16] 0.0, 128
  %364 = vxpose.xlu0.b32.cont [9/16] 0.0, 128
  %365 = vxpose.xlu0.b32.cont [10/16] 0.0, 128
  %366 = vxpose.xlu0.b32.cont [11/16] 0.0, 128
  %367 = vxpose.xlu0.b32.cont [12/16] 0.0, 128
  %368 = vxpose.xlu0.b32.cont [13/16] 0.0, 128
  %369 = vxpose.xlu0.b32.cont [14/16] 0.0, 128
  %370 = vxpose.xlu0.b32.cont [15/16] 0.0, 128
  %371 = vxpose.xlu0.b32.end [16/16] 0.0, 128
  %v372 = vpop.trf.xlu0
  %v373 = vpop.trf.xlu0
  %v374 = vpop.trf.xlu0
  %v375 = vpop.trf.xlu0
  %v376 = vpop.trf.xlu0
  %v377 = vpop.trf.xlu0
  %v378 = vpop.trf.xlu0
  %v379 = vpop.trf.xlu0
  %v380 = vpop.trf.xlu0
  %v381 = vpop.trf.xlu0
  %v382 = vpop.trf.xlu0
  %v383 = vpop.trf.xlu0
  %v384 = vpop.trf.xlu0
  %v385 = vpop.trf.xlu0
  %v386 = vpop.trf.xlu0
  %v387 = vpop.trf.xlu0
  %vm388 = vcmask 367616
  %v390 = vsel %vm388, %v372, 0
  %v393 = vsel %vm388, %v373, 0
  %vm395 = vcmask 1044480
  %v397 = vsel %vm395, %v355, 0
  %399 = vmatprep.subr.mxu0 0.0
  %400 = vmatpush1.msra.mxu0 %v350
  %401 = vmatprep.subr.mxu0 0.0
  %402 = vmatpush1.msra.mxu0 %v351
  %403 = vmatprep.subr.mxu0 0.0
  %404 = vmatpush1.msra.mxu0 %v352
  %405 = vmatprep.subr.mxu0 0.0
  %406 = vmatpush1.msra.mxu0 %v353
  %407 = vmatprep.subr.mxu0 0.0
  %408 = vmatpush1.msra.mxu0 %v354
  %409 = vmatprep.subr.mxu0 0.0
  %410 = vmatpush1.msra.mxu0 %v397
  %411 = vmatprep.subr.mxu0 0.0
  %412 = vmatpush1.msra.mxu0 0.0
  %413 = vmatprep.subr.mxu0 0.0
  %414 = vmatpush1.msra.mxu0 0.0
  %415 = vmatprep.subr.mxu0 0.0
  %416 = vmatpush1.msra.mxu0 0.0
  %417 = vmatprep.subr.mxu0 0.0
  %418 = vmatpush1.msra.mxu0 0.0
  %419 = vmatprep.subr.mxu0 0.0
  %420 = vmatpush1.msra.mxu0 0.0
  %421 = vmatprep.subr.mxu0 0.0
  %422 = vmatpush1.msra.mxu0 0.0
  %423 = vmatprep.subr.mxu0 0.0
  %424 = vmatpush1.msra.mxu0 0.0
  %425 = vmatprep.subr.mxu0 0.0
  %426 = vmatpush1.msra.mxu0 0.0
  %427 = vmatprep.subr.mxu0 0.0
  %428 = vmatpush1.msra.mxu0 0.0
  %429 = vmatprep.subr.mxu0 0.0
  %430 = vmatpush1.msra.mxu0 0.0
  %431 = vmatprep.subr.mxu0 0.0
  %432 = vmatpush1.msra.mxu0 0.0
  %433 = vmatprep.subr.mxu0 0.0
  %434 = vmatpush1.msra.mxu0 0.0
  %435 = vmatprep.subr.mxu0 0.0
  %436 = vmatpush1.msra.mxu0 0.0
  %437 = vmatprep.subr.mxu0 0.0
  %438 = vmatpush1.msra.mxu0 0.0
  %439 = vmatprep.subr.mxu0 0.0
  %440 = vmatpush1.msra.mxu0 0.0
  %441 = vmatprep.subr.mxu0 0.0
  %442 = vmatpush1.msra.mxu0 0.0
  %443 = vmatprep.subr.mxu0 0.0
  %444 = vmatpush1.msra.mxu0 0.0
  %445 = vmatprep.subr.mxu0 0.0
  %446 = vmatpush1.msra.mxu0 0.0
  %447 = vmatprep.subr.mxu0 0.0
  %448 = vmatpush1.msra.mxu0 0.0
  %449 = vmatprep.subr.mxu0 0.0
  %450 = vmatpush1.msra.mxu0 0.0
  %451 = vmatprep.subr.mxu0 0.0
  %452 = vmatpush1.msra.mxu0 0.0
  %453 = vmatprep.subr.mxu0 0.0
  %454 = vmatpush1.msra.mxu0 0.0
  %455 = vmatprep.subr.mxu0 0.0
  %456 = vmatpush1.msra.mxu0 0.0
  %457 = vmatprep.subr.mxu0 0.0
  %458 = vmatpush1.msra.mxu0 0.0
  %459 = vmatprep.subr.mxu0 0.0
  %460 = vmatpush1.msra.mxu0 0.0
  %461 = vmatprep.subr.mxu0 0.0
  %462 = vmatpush1.msra.mxu0 0.0
  %463 = vmatprep.mubr.f32.mxu0 0.0
  %464 = vmatmul.mubr.f32.gmra.mrb[0].mxu0 %v390
  %v465 = vpop.f32.mrb[0].mxu0
  %v466 = vadd.f32 0.0, %v465
  %v467 = vpop.f32.mrb[0].mxu0
  %468 = vmatprep.mubr.f32.mxu0 0.0
  %469 = vmatmul.mubr.f32.gmra.mrb[0].mxu0 %v393
  %v470 = vpop.f32.mrb[0].mxu0
  %v471 = vadd.f32 0.0, %v470
  %v472 = vpop.f32.mrb[0].mxu0
  %473 = vdwg.mxu0
  %474 = vst.msk [vmem:[%s4] sm:$0xff] %vm388, %v466
  %475 = vst.msk [vmem:[%s4 + $0x8] sm:$0xff] %vm388, %v471
  // Predicated region
  $region18: #{soft_trade_forward.1} parent=0 // pred_check
    _
  $region19: #{soft_trade_forward.1} parent=0 // pred_check_branch
    %477 = sbr.rel (0) target = $region21
  $region20: #{soft_trade_forward.1} parent=0 // pred_region
    _
  $region21: #{soft_trade_forward.1} parent=0 // pred_fallthru
    _
  // Predicated region
  $region22: #{soft_trade_forward.1} parent=0 // pred_check
    _
  $region23: #{soft_trade_forward.1} parent=0 // pred_check_branch
    %479 = sbr.rel (0) target = $region25
  $region24: #{soft_trade_forward.1} parent=0 // pred_region
    _
  $region25: #{soft_trade_forward.1} parent=0 // pred_fallthru
    _
  // Predicated region
  $region26: #{soft_trade_forward.1} parent=0 // pred_check
    _
  $region27: #{soft_trade_forward.1} parent=0 // pred_check_branch
    %481 = sbr.rel (0) target = $region29
  $region28: #{soft_trade_forward.1} parent=0 // pred_region
    _
  $region29: #{soft_trade_forward.1} parent=0 // pred_fallthru
    _
  // Predicated region
  $region30: #{soft_trade_forward.1} parent=0 // pred_check
    _
  $region31: #{soft_trade_forward.1} parent=0 // pred_check_branch
    %483 = sbr.rel (0) target = $region33
  $region32: #{soft_trade_forward.1} parent=0 // pred_region
    _
  $region33: #{soft_trade_forward.1} parent=0 // pred_fallthru
    _

</llo_original>
